<compile_context>
chip_gen: v7x
topology: tpu7x:2x2x1
jax: 0.10.0
libtpu: 0.0.40
codegen_flags: <defaults>
</compile_context>

<pallas_src>
import functools

import jax
import jax.numpy as jnp
from jax import lax
from jax.experimental import pallas as pl
from jax.experimental.pallas import tpu as pltpu

EPS = 1e-5
_INV_SQRT2 = 0.7071067811865476


def _chan_layer_norm(x, g):
    """dalle2_pytorch ChanLayerNorm over the channel (last) axis.

    x: (N, C), g: (C,).  Matches: x = x / x.amax(dim=1); var unbiased=False.
    The approx reciprocal on amax is safe: a relative scale error on x cancels in
    (x - mean) * rsqrt(var + eps) up to the tiny eps term.
    """
    amax = jnp.max(x, axis=-1, keepdims=True)
    x = x * pl.reciprocal(amax, approx=True)
    mean = jnp.mean(x, axis=-1, keepdims=True)
    var = jnp.mean(jnp.square(x - mean), axis=-1, keepdims=True)
    return (x - mean) * lax.rsqrt(var + EPS) * g


# ----------------------------------------------------------------------------
# Pass A: per-(batch, head) context with online k-softmax over the sequence axis.
# Accumulator is stored transposed: acc[e, d] = sum_n v[n, e] * exp(k[n, d] - m_d)
# so all rescales broadcast along lanes (no small transposes needed).
# ----------------------------------------------------------------------------
def _ctx_kernel(x_ref, wkv_ref, seg_ref, g1_ref, ctx_ref,
                m_ref, l_ref, acc_ref,
                *, inner, scale, compute_dtype):
    n = pl.program_id(1)

    @pl.when(n == 0)
    def _():
        m_ref[...] = jnp.full_like(m_ref, -jnp.inf)
        l_ref[...] = jnp.zeros_like(l_ref)
        acc_ref[...] = jnp.zeros_like(acc_ref)

    xn = _chan_layer_norm(x_ref[0], g1_ref[0]).astype(compute_dtype)     # (tn, C)

    # Fused k/v projection: one MXU pass over xn with a 2*inner-wide RHS.
    kv = jnp.dot(xn, wkv_ref[...], preferred_element_type=jnp.float32)   # (tn, 2*inner)
    k = kv[:, :inner]
    v = kv[:, inner:]

    # Online softmax of k over the sequence axis (independent per column).
    m_old = m_ref[...]                                                   # (1, inner)
    m_new = jnp.maximum(m_old, jnp.max(k, axis=0, keepdims=True))
    alpha = jnp.exp(m_old - m_new)                                       # (1, inner)
    p = jnp.exp(k - m_new)                                               # (tn, inner)
    l_ref[...] = alpha * l_ref[...] + jnp.sum(p, axis=0, keepdims=True)

    # acc[e, d] += sum_n v[n, e] * p[n, d]   (single full-width MXU matmul)
    pv = lax.dot_general(v.astype(compute_dtype), p.astype(compute_dtype),
                         (((0,), (0,)), ((), ())),
                         preferred_element_type=jnp.float32)             # (inner, inner)
    acc_ref[...] = acc_ref[...] * alpha + pv
    m_ref[...] = m_new

    @pl.when(n == pl.num_programs(1) - 1)
    def _():
        # Fold head block-diagonal mask, q-scale and 1/sum(exp(k)) into the tiny
        # (inner, inner) epilogue; store directly in compute_dtype for pass B.
        inv_l = pl.reciprocal(l_ref[...], approx=True) * jnp.float32(scale)  # (1, inner)
        ctx_ref[0] = (acc_ref[...] * seg_ref[...] * inv_l).astype(ctx_ref.dtype)


# ----------------------------------------------------------------------------
# Pass B: q softmax (per head, full-width), out = q_sm @ ctx^T, GELU, to_out, norm.
# ----------------------------------------------------------------------------
def _out_kernel(x_ref, wq_ref, ctx_ref, seg_ref, wout_ref, g1_ref, g2_ref, o_ref,
                *, compute_dtype):
    xn = _chan_layer_norm(x_ref[0], g1_ref[0]).astype(compute_dtype)     # (tn, C)
    q = jnp.dot(xn, wq_ref[...], preferred_element_type=jnp.float32)     # (tn, inner)

    # Per-head softmax over the feature dim, done full-width.  Subtracting the
    # row-global max is exact (it is constant within each head's lanes); per-head
    # denominators are segment sums computed with one matmul against the
    # precomputed block mask.
    eq = jnp.exp(q - jnp.max(q, axis=-1, keepdims=True))                 # (tn, inner)
    denom = jnp.dot(eq.astype(compute_dtype), seg_ref[...],
                    preferred_element_type=jnp.float32)                  # (tn, inner)
    qsm = eq * pl.reciprocal(denom, approx=True)

    # out[n, e] = sum_d qsm[n, d] * ctx_T[e, d]  (scale + head mask already in ctx_T)
    out = lax.dot_general(qsm.astype(compute_dtype), ctx_ref[0],
                          (((1,), (1,)), ((), ())),
                          preferred_element_type=jnp.float32)            # (tn, inner)

    # Exact (erf) GELU -- PyTorch nn.GELU default.
    out = 0.5 * out * (1.0 + lax.erf(out * _INV_SQRT2))

    out = jnp.dot(out.astype(compute_dtype), wout_ref[...],
                  preferred_element_type=jnp.float32)                    # (tn, C)
    o_ref[0] = _chan_layer_norm(out, g2_ref[0])


# ----------------------------------------------------------------------------
# Generation-aware tile / VMEM-budget selection
# ----------------------------------------------------------------------------
def _tpu_vmem_capacity_bytes():
    try:
        return int(pltpu.get_tpu_info().vmem_capacity_bytes)
    except Exception:
        return 64 << 20  # conservative fallback (v7x per-TensorCore VMEM)


def _vmem_estimate(tn, c, inner, compute_itemsize):
    """Rough per-step VMEM working set (max of pass A / pass B), bytes."""
    f4, ci = 4, compute_itemsize
    stream = 4 * tn * c * f4                           # x tile + out tile, double-buffered
    weights = 2 * (4 * c * inner) * ci                 # w_kv + w_q + w_out^T, double-buffered
    consts = 2 * (2 * inner * inner) * ci + 4 * c * f4  # seg + ctx blocks, gains
    scratch = (inner * inner + 2 * inner) * f4
    interm = 10 * tn * max(2 * inner, c) * f4          # kv/p/q/eq/out temporaries
    return stream + weights + consts + scratch + interm


def _candidate_tiles(n, target):
    cands = [t for t in range(min(target, n), 7, -1) if t % 8 == 0 and n % t == 0]
    if n <= target or not cands:
        cands = [n] + cands  # whole axis as a candidate (full-dim blocks are legal)
    return cands


def _choose_tiling(n, c, inner, compute_itemsize, forced_tile=None):
    cap_total = _tpu_vmem_capacity_bytes()
    # Bigger tiles on 128 MiB parts (v5e/v6e), smaller on 64 MiB v7x.
    target = 1024 if cap_total >= (96 << 20) else 512
    budget = min(int(cap_total * 0.75), 100 << 20)

    cands = [forced_tile] if forced_tile is not None else _candidate_tiles(n, target)
    for tn in cands:
        est = _vmem_estimate(tn, c, inner, compute_itemsize)
        if est <= budget:
            limit = max(min(int(est * 1.5), budget), min(32 << 20, budget))
            return tn, limit
    raise ValueError(
        f"LinearAttention pallas kernel: no sequence tile of N={n} fits in the "
        f"VMEM budget ({budget} bytes, capacity {cap_total}); pad H*W or reduce "
        f"inner dim.")


# ----------------------------------------------------------------------------
# Wrapper
# ----------------------------------------------------------------------------
def linear_attention(fmap, w_qkv, w_out, g1, g2, *, heads, dim_head,
                     tile_n=None, compute_dtype=jnp.bfloat16):
    """fmap: (B, C, H, W) float32 (NCHW, as in PyTorch).  Returns (B, C, H, W).

    w_qkv: (3*inner, C)  -- Conv2d(dim, inner*3, 1, bias=False).weight[..., 0, 0]
    w_out: (C, inner)    -- Conv2d(inner, dim, 1, bias=False).weight[..., 0, 0]
    g1, g2: (1, C)       -- pre-norm / post-norm ChanLayerNorm gains
    compute_dtype: MXU operand dtype (bf16 default; accumulation is always f32).
    """
    B, C, H, W = fmap.shape
    N = H * W
    inner = heads * dim_head
    scale = dim_head ** -0.5

    x = jnp.transpose(fmap, (0, 2, 3, 1)).reshape(B, N, C)

    # Pre-transpose / pre-split / pre-cast the weights host-side (once) so no weight
    # tile is ever transposed or re-cast inside a kernel.
    wqkv_t = jnp.transpose(w_qkv).astype(compute_dtype)   # (C, 3*inner) = [q | k | v]
    w_q = wqkv_t[:, :inner]                                # (C, inner)
    w_kv = wqkv_t[:, inner:]                               # (C, 2*inner) = [k | v]
    w_out_t = jnp.transpose(w_out).astype(compute_dtype)   # (inner, C)
    g1 = jnp.reshape(g1, (1, C)).astype(jnp.float32)
    g2 = jnp.reshape(g2, (1, C)).astype(jnp.float32)

    # Precomputed head block-diagonal mask, shared by both passes.
    hid = jnp.arange(inner, dtype=jnp.int32) // dim_head
    seg = (hid[:, None] == hid[None, :]).astype(compute_dtype)   # (inner, inner)

    tn, vmem_limit = _choose_tiling(N, C, inner, jnp.dtype(compute_dtype).itemsize,
                                    forced_tile=tile_n)
    assert N % tn == 0 and (tn % 8 == 0 or tn == N), (N, tn)
    n_tiles = N // tn

    # ---------------- pass A: per-batch per-head context ----------------
    ctx_kernel = functools.partial(
        _ctx_kernel, inner=inner, scale=scale, compute_dtype=compute_dtype)
    ctx_t = pl.pallas_call(
        ctx_kernel,
        out_shape=jax.ShapeDtypeStruct((B, inner, inner), compute_dtype),
        grid_spec=pltpu.PrefetchScalarGridSpec(
            num_scalar_prefetch=0,
            grid=(B, n_tiles),
            in_specs=[
                pl.BlockSpec((1, tn, C), lambda b, n: (b, n, 0)),       # x tile
                pl.BlockSpec((C, 2 * inner), lambda b, n: (0, 0)),      # w_kv
                pl.BlockSpec((inner, inner), lambda b, n: (0, 0)),      # head mask
                pl.BlockSpec((1, C), lambda b, n: (0, 0)),              # g1
            ],
            out_specs=pl.BlockSpec((1, inner, inner), lambda b, n: (b, 0, 0)),
            scratch_shapes=[
                pltpu.VMEM((1, inner), jnp.float32),       # running column max of k
                pltpu.VMEM((1, inner), jnp.float32),       # running column sum exp(k)
                pltpu.VMEM((inner, inner), jnp.float32),   # context accumulator (e, d)
            ],
        ),
        compiler_params=pltpu.CompilerParams(
            dimension_semantics=("parallel", "arbitrary"),
            vmem_limit_bytes=vmem_limit),
    )(x, w_kv, seg, g1)

    # ---------------- pass B: attention output / GELU / to_out / norm ----------------
    out_kernel = functools.partial(_out_kernel, compute_dtype=compute_dtype)
    out = pl.pallas_call(
        out_kernel,
        out_shape=jax.ShapeDtypeStruct((B, N, C), jnp.float32),
        grid_spec=pltpu.PrefetchScalarGridSpec(
            num_scalar_prefetch=0,
            grid=(B, n_tiles),
            in_specs=[
                pl.BlockSpec((1, tn, C), lambda b, n: (b, n, 0)),       # x tile
                pl.BlockSpec((C, inner), lambda b, n: (0, 0)),          # w_q
                pl.BlockSpec((1, inner, inner), lambda b, n: (b, 0, 0)),  # ctx_T
                pl.BlockSpec((inner, inner), lambda b, n: (0, 0)),      # head mask
                pl.BlockSpec((inner, C), lambda b, n: (0, 0)),          # w_out^T
                pl.BlockSpec((1, C), lambda b, n: (0, 0)),              # g1
                pl.BlockSpec((1, C), lambda b, n: (0, 0)),              # g2
            ],
            out_specs=pl.BlockSpec((1, tn, C), lambda b, n: (b, n, 0)),
        ),
        compiler_params=pltpu.CompilerParams(
            dimension_semantics=("parallel", "parallel"),
            vmem_limit_bytes=vmem_limit),
    )(x, w_q, ctx_t, seg, w_out_t, g1, g2)

    return jnp.transpose(out.reshape(B, H, W, C), (0, 3, 1, 2))


# ----------------------------------------------------------------------------
# Pure-JAX reference (mirrors the PyTorch module) for a sanity check.
# ----------------------------------------------------------------------------
def _reference(fmap, w_qkv, w_out, g1, g2, *, heads, dim_head):
    B, C, H, W = fmap.shape
    N = H * W
    inner = heads * dim_head
    scale = dim_head ** -0.5
    hp = lax.Precision.HIGHEST

    def cln(x_nc, g):
        amax = jnp.max(x_nc, axis=-1, keepdims=True)
        x_nc = x_nc / amax
        mean = jnp.mean(x_nc, axis=-1, keepdims=True)
        var = jnp.mean((x_nc - mean) ** 2, axis=-1, keepdims=True)
        return (x_nc - mean) * lax.rsqrt(var + EPS) * g

    x = jnp.transpose(fmap, (0, 2, 3, 1)).reshape(B, N, C)
    xn = cln(x, g1.reshape(C))
    qkv = jnp.einsum('bnc,oc->bno', xn, w_qkv, precision=hp)
    q, k, v = jnp.split(qkv, 3, axis=-1)
    q = q.reshape(B, N, heads, dim_head)
    k = k.reshape(B, N, heads, dim_head)
    v = v.reshape(B, N, heads, dim_head)
    q = jax.nn.softmax(q, axis=-1) * scale
    k = jax.nn.softmax(k, axis=1)
    ctx = jnp.einsum('bnhd,bnhe->bhde', k, v, precision=hp)
    out = jnp.einsum('bnhd,bhde->bnhe', q, ctx, precision=hp).reshape(B, N, inner)
    out = 0.5 * out * (1.0 + lax.erf(out * _INV_SQRT2))
    out = jnp.einsum('bni,ci->bnc', out, w_out, precision=hp)
    out = cln(out, g2.reshape(C))
    return jnp.transpose(out.reshape(B, H, W, C), (0, 3, 1, 2))


if __name__ == "__main__":
    B, dim, H, W = 2, 8, 16, 16
    heads, dim_head = 2, 16
    inner_dim = heads * dim_head

    key = jax.random.PRNGKey(0)
    k_x, k_qkv, k_out = jax.random.split(key, 3)

    fmap = jax.random.normal(k_x, (B, dim, H, W), dtype=jnp.float32)
    # Shapes match the PyTorch module's parameters.
    w_qkv = 0.1 * jax.random.normal(k_qkv, (3 * inner_dim, dim), dtype=jnp.float32)
    w_out = 0.1 * jax.random.normal(k_out, (dim, inner_dim), dtype=jnp.float32)
    g1 = jnp.ones((1, dim), dtype=jnp.float32)
    g2 = jnp.ones((1, dim), dtype=jnp.float32)

    ref = jax.block_until_ready(
        _reference(fmap, w_qkv, w_out, g1, g2, heads=heads, dim_head=dim_head))

    # Default (bf16 MXU operand) path.  tile_n=128 -> 2 sequence tiles, which
    # exercises the online k-softmax reduction in pass A and the N-tiled grid in B.
    out_bf16 = jax.block_until_ready(
        linear_attention(fmap, w_qkv, w_out, g1, g2,
                         heads=heads, dim_head=dim_head, tile_n=128))
    assert out_bf16.shape == (B, dim, H, W), out_bf16.shape
    err_bf16 = float(jnp.max(jnp.abs(out_bf16 - ref)))
    assert err_bf16 < 1.5e-1, f"bf16 path max abs error vs reference: {err_bf16}"

    # Full-f32 operand path: tight check against the PyTorch-equivalent reference.
    out_f32 = jax.block_until_ready(
        linear_attention(fmap, w_qkv, w_out, g1, g2,
                         heads=heads, dim_head=dim_head, tile_n=128,
                         compute_dtype=jnp.float32))
    err_f32 = float(jnp.max(jnp.abs(out_f32 - ref)))
    assert err_f32 < 5e-2, f"f32 path max abs error vs reference: {err_f32}"

    print("KERNEL_OK")
</pallas_src>

<mosaic_0001>
module attributes {stable_mosaic.version = 11 : i64} {
  func.func @_ctx_kernel(%arg0: i32, %arg1: i32, %arg2: memref<1x128x8xf32, #tpu.memory_space<vmem>>, %arg3: memref<8x64xbf16, #tpu.memory_space<vmem>>, %arg4: memref<32x32xbf16, #tpu.memory_space<vmem>>, %arg5: memref<1x8xf32, #tpu.memory_space<vmem>>, %arg6: memref<1x32x32xbf16, #tpu.memory_space<vmem>>, %arg7: memref<1x32xf32, #tpu.memory_space<vmem>>, %arg8: memref<1x32xf32, #tpu.memory_space<vmem>>, %arg9: memref<32x32xf32, #tpu.memory_space<vmem>>) attributes {dimension_semantics = [#tpu.dimension_semantics<parallel>, #tpu.dimension_semantics<arbitrary>], iteration_bounds = array<i64: 2, 2>, scalar_prefetch = 0 : i64, scratch_operands = 3 : i64, tpu.core_type = #tpu.core_type<tc>, window_params = [{transform_indices = @transform_0, window_bounds = array<i64: 1, 128, 8>}, {pipeline_mode = #tpu.pipeline_mode<synchronous>, transform_indices = @transform_1, window_bounds = array<i64: 8, 64>}, {pipeline_mode = #tpu.pipeline_mode<synchronous>, transform_indices = @transform_2, window_bounds = array<i64: 32, 32>}, {pipeline_mode = #tpu.pipeline_mode<synchronous>, transform_indices = @transform_3, window_bounds = array<i64: 1, 8>}, {transform_indices = @transform_4, window_bounds = array<i64: 1, 32, 32>}]} {
    %c0_i32 = arith.constant 0 : i32
    %0 = arith.cmpi eq, %arg1, %c0_i32 : i32
    %1 = arith.extui %0 : i1 to i32
    %c0_i32_0 = arith.constant 0 : i32
    %2 = arith.cmpi ne, %1, %c0_i32_0 : i32
    scf.if %2 {
      %cst_29 = arith.constant 0xFF800000 : f32
      %65 = vector.broadcast %cst_29 : f32 to vector<1x32xf32>
      %c0_30 = arith.constant 0 : index
      %c0_31 = arith.constant 0 : index
      %66 = vector.load %arg7[%c0_30, %c0_31] : memref<1x32xf32, #tpu.memory_space<vmem>>, vector<1x32xf32>
      tpu.vector_store %arg7[%c0_30, %c0_31], %65 {strides = array<i32>} : memref<1x32xf32, #tpu.memory_space<vmem>>, vector<1x32xf32>,
      %cst_32 = arith.constant 0.000000e+00 : f32
      %67 = vector.broadcast %cst_32 : f32 to vector<1x32xf32>
      %c0_33 = arith.constant 0 : index
      %c0_34 = arith.constant 0 : index
      %68 = vector.load %arg8[%c0_33, %c0_34] : memref<1x32xf32, #tpu.memory_space<vmem>>, vector<1x32xf32>
      tpu.vector_store %arg8[%c0_33, %c0_34], %67 {strides = array<i32>} : memref<1x32xf32, #tpu.memory_space<vmem>>, vector<1x32xf32>,
      %cst_35 = arith.constant 0.000000e+00 : f32
      %69 = vector.broadcast %cst_35 : f32 to vector<32x32xf32>
      %c0_36 = arith.constant 0 : index
      %c0_37 = arith.constant 0 : index
      %70 = vector.load %arg9[%c0_36, %c0_37] : memref<32x32xf32, #tpu.memory_space<vmem>>, vector<32x32xf32>
      tpu.vector_store %arg9[%c0_36, %c0_37], %69 {strides = array<i32>} : memref<32x32xf32, #tpu.memory_space<vmem>>, vector<32x32xf32>,
    } else {
    }
    %c0 = arith.constant 0 : index
    %c0_1 = arith.constant 0 : index
    %c0_2 = arith.constant 0 : index
    %3 = vector.load %arg2[%c0, %c0_1, %c0_2] : memref<1x128x8xf32, #tpu.memory_space<vmem>>, vector<1x128x8xf32>
    %4 = vector.shape_cast %3 : vector<1x128x8xf32> to vector<128x8xf32>
    %c0_3 = arith.constant 0 : index
    %c0_4 = arith.constant 0 : index
    %5 = vector.load %arg5[%c0_3, %c0_4] : memref<1x8xf32, #tpu.memory_space<vmem>>, vector<1x8xf32>
    %6 = vector.shape_cast %5 : vector<1x8xf32> to vector<8xf32>
    %cst = arith.constant dense<0xFF800000> : vector<128xf32>
    %7 = vector.multi_reduction <maximumf>, %4, %cst [1] : vector<128x8xf32> to vector<128xf32>
    %8 = vector.shape_cast %7 : vector<128xf32> to vector<128x1xf32>
    %9 = tpu.reciprocal %8 {approx = true} : vector<128x1xf32> -> vector<128x1xf32>
    %10 = vector.broadcast %9 : vector<128x1xf32> to vector<128x8xf32>
    %11 = arith.mulf %4, %10 : vector<128x8xf32>
    %cst_5 = arith.constant dense<0.000000e+00> : vector<128xf32>
    %12 = vector.multi_reduction <add>, %11, %cst_5 [1] : vector<128x8xf32> to vector<128xf32>
    %13 = vector.shape_cast %12 : vector<128xf32> to vector<128x1xf32>
    %cst_6 = arith.constant 8.000000e+00 : f32
    %14 = vector.broadcast %cst_6 : f32 to vector<128x1xf32>
    %15 = arith.divf %13, %14 : vector<128x1xf32>
    %16 = vector.broadcast %15 : vector<128x1xf32> to vector<128x8xf32>
    %17 = arith.subf %11, %16 : vector<128x8xf32>
    %18 = arith.mulf %17, %17 : vector<128x8xf32>
    %cst_7 = arith.constant dense<0.000000e+00> : vector<128xf32>
    %19 = vector.multi_reduction <add>, %18, %cst_7 [1] : vector<128x8xf32> to vector<128xf32>
    %20 = vector.shape_cast %19 : vector<128xf32> to vector<128x1xf32>
    %cst_8 = arith.constant 8.000000e+00 : f32
    %21 = vector.broadcast %cst_8 : f32 to vector<128x1xf32>
    %22 = arith.divf %20, %21 : vector<128x1xf32>
    %23 = vector.broadcast %15 : vector<128x1xf32> to vector<128x8xf32>
    %24 = arith.subf %11, %23 : vector<128x8xf32>
    %cst_9 = arith.constant 9.99999974E-6 : f32
    %25 = vector.broadcast %cst_9 : f32 to vector<128x1xf32>
    %26 = arith.addf %22, %25 : vector<128x1xf32>
    %27 = math.rsqrt %26 : vector<128x1xf32>
    %28 = vector.broadcast %27 : vector<128x1xf32> to vector<128x8xf32>
    %29 = arith.mulf %24, %28 : vector<128x8xf32>
    %30 = vector.shape_cast %6 : vector<8xf32> to vector<1x8xf32>
    %31 = vector.broadcast %30 : vector<1x8xf32> to vector<128x8xf32>
    %32 = arith.mulf %29, %31 : vector<128x8xf32>
    %33 = arith.truncf %32 : vector<128x8xf32> to vector<128x8xbf16>
    %c0_10 = arith.constant 0 : index
    %c0_11 = arith.constant 0 : index
    %34 = vector.load %arg3[%c0_10, %c0_11] : memref<8x64xbf16, #tpu.memory_space<vmem>>, vector<8x64xbf16>
    %cst_12 = arith.constant dense<0.000000e+00> : vector<128x64xf32>
    %35 = tpu.matmul %33, %34, %cst_12 {dimension_numbers = #tpu.dot_dimension_numbers<[1], [0], [0], [1], [0, 0, 1, 1], [], []>} : vector<128x8xbf16>, vector<8x64xbf16>, vector<128x64xf32> -> vector<128x64xf32>
    %36 = vector.extract_strided_slice %35 {offsets = [0, 0], sizes = [128, 32], strides = [1, 1]} : vector<128x64xf32> to vector<128x32xf32>
    %37 = vector.extract_strided_slice %35 {offsets = [0, 32], sizes = [128, 32], strides = [1, 1]} : vector<128x64xf32> to vector<128x32xf32>
    %c0_13 = arith.constant 0 : index
    %c0_14 = arith.constant 0 : index
    %38 = vector.load %arg7[%c0_13, %c0_14] : memref<1x32xf32, #tpu.memory_space<vmem>>, vector<1x32xf32>
    %cst_15 = arith.constant dense<0xFF800000> : vector<32xf32>
    %39 = vector.multi_reduction <maximumf>, %36, %cst_15 [0] : vector<128x32xf32> to vector<32xf32>
    %40 = vector.shape_cast %39 : vector<32xf32> to vector<1x32xf32>
    %41 = arith.maximumf %38, %40 : vector<1x32xf32>
    %42 = arith.subf %38, %41 : vector<1x32xf32>
    %43 = math.exp %42 : vector<1x32xf32>
    %44 = vector.broadcast %41 : vector<1x32xf32> to vector<128x32xf32>
    %45 = arith.subf %36, %44 : vector<128x32xf32>
    %46 = math.exp %45 : vector<128x32xf32>
    %c0_16 = arith.constant 0 : index
    %c0_17 = arith.constant 0 : index
    %47 = vector.load %arg8[%c0_16, %c0_17] : memref<1x32xf32, #tpu.memory_space<vmem>>, vector<1x32xf32>
    %48 = arith.mulf %43, %47 : vector<1x32xf32>
    %cst_18 = arith.constant dense<0.000000e+00> : vector<32xf32>
    %49 = vector.multi_reduction <add>, %46, %cst_18 [0] : vector<128x32xf32> to vector<32xf32>
    %50 = vector.shape_cast %49 : vector<32xf32> to vector<1x32xf32>
    %51 = arith.addf %48, %50 : vector<1x32xf32>
    %c0_19 = arith.constant 0 : index
    %c0_20 = arith.constant 0 : index
    %52 = vector.load %arg8[%c0_19, %c0_20] : memref<1x32xf32, #tpu.memory_space<vmem>>, vector<1x32xf32>
    tpu.vector_store %arg8[%c0_19, %c0_20], %51 {strides = array<i32>} : memref<1x32xf32, #tpu.memory_space<vmem>>, vector<1x32xf32>,
    %53 = arith.truncf %37 : vector<128x32xf32> to vector<128x32xbf16>
    %54 = arith.truncf %46 : vector<128x32xf32> to vector<128x32xbf16>
    %cst_21 = arith.constant dense<0.000000e+00> : vector<32x32xf32>
    %55 = tpu.matmul %53, %54, %cst_21 {dimension_numbers = #tpu.dot_dimension_numbers<[0], [0], [1], [1], [0, 1, 1, 1], [], []>} : vector<128x32xbf16>, vector<128x32xbf16>, vector<32x32xf32> -> vector<32x32xf32>
    %c0_22 = arith.constant 0 : index
    %c0_23 = arith.constant 0 : index
    %56 = vector.load %arg9[%c0_22, %c0_23] : memref<32x32xf32, #tpu.memory_space<vmem>>, vector<32x32xf32>
    %57 = vector.broadcast %43 : vector<1x32xf32> to vector<32x32xf32>
    %58 = arith.mulf %56, %57 : vector<32x32xf32>
    %59 = arith.addf %58, %55 : vector<32x32xf32>
    %c0_24 = arith.constant 0 : index
    %c0_25 = arith.constant 0 : index
    %60 = vector.load %arg9[%c0_24, %c0_25] : memref<32x32xf32, #tpu.memory_space<vmem>>, vector<32x32xf32>
    tpu.vector_store %arg9[%c0_24, %c0_25], %59 {strides = array<i32>} : memref<32x32xf32, #tpu.memory_space<vmem>>, vector<32x32xf32>,
    %c0_26 = arith.constant 0 : index
    %c0_27 = arith.constant 0 : index
    %61 = vector.load %arg7[%c0_26, %c0_27] : memref<1x32xf32, #tpu.memory_space<vmem>>, vector<1x32xf32>
    tpu.vector_store %arg7[%c0_26, %c0_27], %41 {strides = array<i32>} : memref<1x32xf32, #tpu.memory_space<vmem>>, vector<1x32xf32>,
    %c1_i32 = arith.constant 1 : i32
    %62 = arith.cmpi eq, %arg1, %c1_i32 : i32
    %63 = arith.extui %62 : i1 to i32
    %c0_i32_28 = arith.constant 0 : i32
    %64 = arith.cmpi ne, %63, %c0_i32_28 : i32
    scf.if %64 {
      %c0_29 = arith.constant 0 : index
      %c0_30 = arith.constant 0 : index
      %65 = vector.load %arg8[%c0_29, %c0_30] : memref<1x32xf32, #tpu.memory_space<vmem>>, vector<1x32xf32>
      %66 = tpu.reciprocal %65 {approx = true} : vector<1x32xf32> -> vector<1x32xf32>
      %cst_31 = arith.constant 2.500000e-01 : f32
      %67 = vector.broadcast %cst_31 : f32 to vector<1x32xf32>
      %68 = arith.mulf %66, %67 : vector<1x32xf32>
      %c0_32 = arith.constant 0 : index
      %c0_33 = arith.constant 0 : index
      %69 = vector.load %arg9[%c0_32, %c0_33] : memref<32x32xf32, #tpu.memory_space<vmem>>, vector<32x32xf32>
      %c0_34 = arith.constant 0 : index
      %c0_35 = arith.constant 0 : index
      %70 = vector.load %arg4[%c0_34, %c0_35] : memref<32x32xbf16, #tpu.memory_space<vmem>>, vector<32x32xbf16>
      %71 = arith.extf %70 : vector<32x32xbf16> to vector<32x32xf32>
      %72 = arith.mulf %69, %71 : vector<32x32xf32>
      %73 = vector.broadcast %68 : vector<1x32xf32> to vector<32x32xf32>
      %74 = arith.mulf %72, %73 : vector<32x32xf32>
      %75 = arith.truncf %74 : vector<32x32xf32> to vector<32x32xbf16>
      %c0_36 = arith.constant 0 : index
      %c0_37 = arith.constant 0 : index
      %c0_38 = arith.constant 0 : index
      %76 = vector.load %arg6[%c0_36, %c0_37, %c0_38] : memref<1x32x32xbf16, #tpu.memory_space<vmem>>, vector<1x32x32xbf16>
      %77 = vector.shape_cast %76 : vector<1x32x32xbf16> to vector<32x32xbf16>
      %78 = vector.shape_cast %75 : vector<32x32xbf16> to vector<1x32x32xbf16>
      tpu.vector_store %arg6[%c0_36, %c0_37, %c0_38], %78 {strides = array<i32>} : memref<1x32x32xbf16, #tpu.memory_space<vmem>>, vector<1x32x32xbf16>,
    } else {
    }
    return
  }
  func.func @transform_0(%arg0: i32, %arg1: i32) -> (i32, i32, i32) {
    %c0_i32 = arith.constant 0 : i32
    %c0_i32_0 = arith.constant 0 : i32
    return %arg0, %arg1, %c0_i32 : i32, i32, i32
  }
  func.func @transform_1(%arg0: i32, %arg1: i32) -> (i32, i32) {
    %c0_i32 = arith.constant 0 : i32
    %c0_i32_0 = arith.constant 0 : i32
    %c0_i32_1 = arith.constant 0 : i32
    return %c0_i32, %c0_i32_0 : i32, i32
  }
  func.func @transform_2(%arg0: i32, %arg1: i32) -> (i32, i32) {
    %c0_i32 = arith.constant 0 : i32
    %c0_i32_0 = arith.constant 0 : i32
    %c0_i32_1 = arith.constant 0 : i32
    return %c0_i32, %c0_i32_0 : i32, i32
  }
  func.func @transform_3(%arg0: i32, %arg1: i32) -> (i32, i32) {
    %c0_i32 = arith.constant 0 : i32
    %c0_i32_0 = arith.constant 0 : i32
    %c0_i32_1 = arith.constant 0 : i32
    return %c0_i32, %c0_i32_0 : i32, i32
  }
  func.func @transform_4(%arg0: i32, %arg1: i32) -> (i32, i32, i32) {
    %c0_i32 = arith.constant 0 : i32
    %c0_i32_0 = arith.constant 0 : i32
    %c0_i32_1 = arith.constant 0 : i32
    return %arg0, %c0_i32, %c0_i32_0 : i32, i32, i32
  }
}

</mosaic_0001>

<llo_original>
// kernel: tpu_custom_call.1
$region0: #{tpu_custom_call.1}
  #allocation0 [shape = 'u32[]', space=smem, size = 0x4, offset = 0x4, fixed_abs, tag = 'smem constant byte address 0x4 - core index']
  #allocation1 [shape = 'u32[144,128]{1,0:T(1,128)}', space=vmem, size = 0x12000, scoped, tag = 'internal scratch']
  #allocation2 [shape = 'f32[1,32]{1,0:T(1,128)}', space=vmem, size = 0x200, scoped, tag = 'scratch operand']
  #allocation3 [shape = 'f32[1,32]{1,0:T(1,128)}', space=vmem, size = 0x200, scoped, tag = 'scratch operand']
  #allocation4 [shape = 'f32[32,32]{1,0:T(8,128)}', space=vmem, size = 0x4000, scoped, tag = 'scratch operand']
  %s0 = inlined_call_operand.vmem [shape: f32[2,256,8], index: 0, kind: input, shape index: {}]
  %s1 = inlined_call_operand.vmem [shape: bf16[8,64], index: 1, kind: input, shape index: {}]
  %s2 = inlined_call_operand.vmem [shape: bf16[32,32], index: 2, kind: input, shape index: {}]
  %s3 = inlined_call_operand.vmem [shape: f32[1,8], index: 3, kind: input, shape index: {}]
  %s4 = inlined_call_operand.hbm [shape: bf16[2,32,32], index: 4, kind: output, shape index: {}]
  %s5 = sld [smem:[#allocation0]]
  $region57: #{tpu_custom_call.1} parent=0
    _
  %s7 = ssub.s32 1, %s5
  %s8 = scalar_select 0, %s7, %s5
  $region1: #{tpu_custom_call.1} parent=0
    #allocation5 [shape = 'u8[16384]{0}', space=vmem, size = 0x4000, scoped, tag = 'output window, operand 0']
    #allocation6 [shape = 's32[2]{0}', space=sflag, size = 0x8, scoped, tag = 'scoped memory for tpu_custom_call.1']
    %9 = vsyncpa [#allocation6], 0
    %s10 = scalar_lea.sflag [#allocation6], 1
    %11 = vsyncpa %s10, 0
    loop: start=0, step=1, limit=6
    $region2: #{tpu_custom_call.1} parent=1 // loop_pre_header
      _
    $region3: #{tpu_custom_call.1} parent=1 // loop_header
      %s13 = sphi 0, %s17
      %p14 = scmp.ge.s32.totalorder %s13, 6
      %s20 = sphi 0, %s32
      %s21 = sphi 0, %s28
      %s22 = sphi 0, %s20
      %s23 = sphi 0, %s21
      %s24 = sphi 0, %s22
      %s25 = sphi 0, %s23
      %s37 = sphi 0, %s39
      %s40 = sphi 0, %s37
      %s41 = sphi 0, %s40
      %s57 = sphi 0, %s41
      %s61 = sphi 0, %s61
      %s63 = sphi 0, %s61
      %s64 = sphi 0, %s63
      %s78 = sphi 0, %s64
      %s82 = sphi 0, %s82
      %s84 = sphi 0, %s82
      %s85 = sphi 0, %s84
      %s99 = sphi 0, %s85
      %s103 = sphi 0, %s103
      %s105 = sphi 0, %s103
      %s106 = sphi 0, %s105
      %s120 = sphi 0, %s106
      %s126 = sphi 0, %s128
      %s129 = sphi 0, %s126
      %s130 = sphi 0, %s129
      %s146 = sphi 0, %s130
    $region4: #{tpu_custom_call.1} parent=1 // loop_header_branch
      %16 = sbr.rel (%p14) target = $region8
    $region5: #{tpu_custom_call.1} parent=1 // loop_body
      %s18 = ssub.s32 %s13, 1
      %s19 = ssub.s32 %s13, 2
      %s26 = sadd.s32 1, %s21
      %p27 = scmp.ge.s32.totalorder %s26, 2
      %s28 = scalar_select %p27, 0, %s26
      %s29 = sadd.s32 1, %s20
      %s30 = scalar_select %p27, %s29, %s20
      %p31 = scmp.ge.s32.totalorder %s30, 2
      %s32 = scalar_select %p31, 0, %s30
      %s33 = ssub.s32 %s20, %s32
      %s34 = ssub.s32 %s21, %s28
      %s35 = sor.u32 %s33, %s34
      %p36 = scmp.eq.s32.totalorder %s35, 0
      %s38 = sadd.s32 %s37, 1
      %s39 = scalar_select %p36, %s37, %s38
      %p42 = pneg %p36
      %p43 = scmp.eq.s32.totalorder %s13, 3
      %p44 = por %p42, %p43
      %p45 = scmp.ne.s32.totalorder %s37, %s40
      %p46 = scmp.eq.s32.totalorder %s13, 0
      %p47 = por %p45, %p46
      %p48 = scmp.ne.s32.totalorder %s37, %s40
      %p49 = scmp.eq.s32.totalorder %s18, 3
      %p50 = por %p48, %p49
      %p51 = scmp.ne.s32.totalorder %s40, %s41
      %p52 = scmp.eq.s32.totalorder %s18, 0
      %p53 = por %p51, %p52
      %p54 = scmp.ne.s32.totalorder %s40, %s41
      %p55 = scmp.eq.s32.totalorder %s19, 3
      %p56 = por %p54, %p55
      %p58 = scmp.ne.s32.totalorder %s41, %s57
      %p59 = scmp.eq.s32.totalorder %s19, 0
      %p60 = por %p58, %p59
      %s62 = sadd.s32 %s61, 1
      %p65 = scmp.eq.s32.totalorder %s13, 3
      %p66 = scmp.ne.s32.totalorder %s61, %s63
      %p67 = scmp.eq.s32.totalorder %s13, 0
      %p68 = por %p66, %p67
      %p69 = scmp.ne.s32.totalorder %s61, %s63
      %p70 = scmp.eq.s32.totalorder %s18, 3
      %p71 = por %p69, %p70
      %p72 = scmp.ne.s32.totalorder %s63, %s64
      %p73 = scmp.eq.s32.totalorder %s18, 0
      %p74 = por %p72, %p73
      %p75 = scmp.ne.s32.totalorder %s63, %s64
      %p76 = scmp.eq.s32.totalorder %s19, 3
      %p77 = por %p75, %p76
      %p79 = scmp.ne.s32.totalorder %s64, %s78
      %p80 = scmp.eq.s32.totalorder %s19, 0
      %p81 = por %p79, %p80
      %s83 = sadd.s32 %s82, 1
      %p86 = scmp.eq.s32.totalorder %s13, 3
      %p87 = scmp.ne.s32.totalorder %s82, %s84
      %p88 = scmp.eq.s32.totalorder %s13, 0
      %p89 = por %p87, %p88
      %p90 = scmp.ne.s32.totalorder %s82, %s84
      %p91 = scmp.eq.s32.totalorder %s18, 3
      %p92 = por %p90, %p91
      %p93 = scmp.ne.s32.totalorder %s84, %s85
      %p94 = scmp.eq.s32.totalorder %s18, 0
      %p95 = por %p93, %p94
      %p96 = scmp.ne.s32.totalorder %s84, %s85
      %p97 = scmp.eq.s32.totalorder %s19, 3
      %p98 = por %p96, %p97
      %p100 = scmp.ne.s32.totalorder %s85, %s99
      %p101 = scmp.eq.s32.totalorder %s19, 0
      %p102 = por %p100, %p101
      %s104 = sadd.s32 %s103, 1
      %p107 = scmp.eq.s32.totalorder %s13, 3
      %p108 = scmp.ne.s32.totalorder %s103, %s105
      %p109 = scmp.eq.s32.totalorder %s13, 0
      %p110 = por %p108, %p109
      %p111 = scmp.ne.s32.totalorder %s103, %s105
      %p112 = scmp.eq.s32.totalorder %s18, 3
      %p113 = por %p111, %p112
      %p114 = scmp.ne.s32.totalorder %s105, %s106
      %p115 = scmp.eq.s32.totalorder %s18, 0
      %p116 = por %p114, %p115
      %p117 = scmp.ne.s32.totalorder %s105, %s106
      %p118 = scmp.eq.s32.totalorder %s19, 3
      %p119 = por %p117, %p118
      %p121 = scmp.ne.s32.totalorder %s106, %s120
      %p122 = scmp.eq.s32.totalorder %s19, 0
      %p123 = por %p121, %p122
      %s124 = ssub.s32 %s20, %s32
      %p125 = scmp.eq.s32.totalorder %s124, 0
      %s127 = sadd.s32 %s126, 1
      %s128 = scalar_select %p125, %s126, %s127
      %p131 = pneg %p125
      %p132 = scmp.eq.s32.totalorder %s13, 3
      %p133 = por %p131, %p132
      %p134 = scmp.ne.s32.totalorder %s126, %s129
      %p135 = scmp.eq.s32.totalorder %s13, 0
      %p136 = por %p134, %p135
      %p137 = scmp.ne.s32.totalorder %s126, %s129
      %p138 = scmp.eq.s32.totalorder %s18, 3
      %p139 = por %p137, %p138
      %p140 = scmp.ne.s32.totalorder %s129, %s130
      %p141 = scmp.eq.s32.totalorder %s18, 0
      %p142 = por %p140, %p141
      %p143 = scmp.ne.s32.totalorder %s129, %s130
      %p144 = scmp.eq.s32.totalorder %s19, 3
      %p145 = por %p143, %p144
      %p147 = scmp.ne.s32.totalorder %s130, %s146
      %p148 = scmp.eq.s32.totalorder %s19, 0
      %p149 = por %p147, %p148
      %p150 = scmp.le.s32.totalorder 1, %s13
      %p151 = scmp.lt.s32.totalorder %s13, 5
      %p152 = pnand %p150, %p151
      %p153 = pneg %p152
      // Predicated region
      $region9: #{tpu_custom_call.1} parent=5 // pred_check
        _
      $region10: #{tpu_custom_call.1} parent=5 // pred_check_branch
        %155 = sbr.rel (%p152) target = $region12
      $region11: #{tpu_custom_call.1} parent=5 // pred_region
        %s156 = ssub.s32 %s13, 1
        // Predicated region
        $region13: #{tpu_custom_call.1} parent=11 // pred_check
          %p157 = pneg %p74
        $region14: #{tpu_custom_call.1} parent=11 // pred_check_branch
          %159 = sbr.rel (%p157) target = $region16
        $region15: #{tpu_custom_call.1} parent=11 // pred_region
          _
        $region16: #{tpu_custom_call.1} parent=11 // pred_fallthru
          _
        // Predicated region
        $region17: #{tpu_custom_call.1} parent=11 // pred_check
          %p160 = pneg %p95
        $region18: #{tpu_custom_call.1} parent=11 // pred_check_branch
          %162 = sbr.rel (%p160) target = $region20
        $region19: #{tpu_custom_call.1} parent=11 // pred_region
          _
        $region20: #{tpu_custom_call.1} parent=11 // pred_fallthru
          _
        // Predicated region
        $region21: #{tpu_custom_call.1} parent=11 // pred_check
          %p163 = pneg %p116
        $region22: #{tpu_custom_call.1} parent=11 // pred_check_branch
          %165 = sbr.rel (%p163) target = $region24
        $region23: #{tpu_custom_call.1} parent=11 // pred_region
          _
        $region24: #{tpu_custom_call.1} parent=11 // pred_fallthru
          _
      $region12: #{tpu_custom_call.1} parent=5 // pred_fallthru
        _
      %p166 = scmp.lt.s32.totalorder %s13, 4
      // Predicated region
      $region25: #{tpu_custom_call.1} parent=5 // pred_check
        %p167 = pneg %p166
      $region26: #{tpu_custom_call.1} parent=5 // pred_check_branch
        %169 = sbr.rel (%p167) target = $region28
      $region27: #{tpu_custom_call.1} parent=5 // pred_region
        // Predicated region
        $region29: #{tpu_custom_call.1} parent=27 // pred_check
          %p170 = pneg %p47
        $region30: #{tpu_custom_call.1} parent=27 // pred_check_branch
          %172 = sbr.rel (%p170) target = $region32
        $region31: #{tpu_custom_call.1} parent=27 // pred_region
          %s173 = smul.u32 16, %s21
          %p174 = scmp.lt.s32.totalorder %s20, 1
          %s175 = scalar_select %p174, %s20, 1
          %p176 = scmp.lt.s32.totalorder %s173, 31
          %s177 = scalar_select %p176, %s173, 31
          %s178 = smul.addr %s175, 32
          %s179 = sadd.s32 %s177, %s178
          %s180 = smul.addr %s179, 8
          %s181 = scalar_lea.vmem %s0, %s180
          %s182 = smul.u32 16, %s21
        $region32: #{tpu_custom_call.1} parent=27 // pred_fallthru
          _
      $region28: #{tpu_custom_call.1} parent=5 // pred_fallthru
        _
      %p183 = scmp.le.s32.totalorder 1, %s13
      %p184 = scmp.lt.s32.totalorder %s13, 5
      %p185 = pnand %p183, %p184
      %p186 = pneg %p185
      // Predicated region
      $region33: #{tpu_custom_call.1} parent=5 // pred_check
        _
      $region34: #{tpu_custom_call.1} parent=5 // pred_check_branch
        %188 = sbr.rel (%p185) target = $region36
      $region35: #{tpu_custom_call.1} parent=5 // pred_region
        %s189 = ssub.s32 %s13, 1
        %s190 = smul.u32 16, %s23
        %p191 = scmp.lt.s32.totalorder %s22, 1
        %s192 = scalar_select %p191, %s22, 1
        %p193 = scmp.lt.s32.totalorder %s190, 31
        %s194 = scalar_select %p193, %s190, 31
        %s195 = smul.addr %s192, 32
        %s196 = sadd.s32 %s194, %s195
        %s197 = smul.addr %s196, 8
        %s198 = scalar_lea.vmem %s0, %s197
        %p199 = pneg %p53
        %p200 = pneg %p50
        %p201 = pneg %p74
        %p202 = pneg %p71
        %p203 = pneg %p95
        %p204 = pneg %p92
        %p205 = pneg %p116
        %p206 = pneg %p113
        %p207 = pneg %p142
        %p208 = pneg %p139
        %s209 = sand.u32 %s129, 1
        %s210 = scalar_lea.sflag [#allocation6], %s209
        %s211 = sand.u32 %s129, 1
        %s212 = smul.addr %s211, 16
        %s213 = scalar_lea.vmem [#allocation5], %s212
        %s214 = smul.u32 16, %s23
        %p215 = scmp.lt.s32.totalorder %s22, 1
        %s216 = scalar_select %p215, %s22, 1
        %p217 = scmp.lt.s32.totalorder %s214, 31
        %s218 = scalar_select %p217, %s214, 31
        %s219 = smul.addr %s216, 32
        %s220 = sadd.s32 %s218, %s219
        %s221 = smul.addr %s220, 8
        %s222 = scalar_lea.vmem %s0, %s221
        %s223 = smul.u32 16, %s23
        %p225 = scmp.eq.s32.totalorder %s23, 0
        // Predicated region
        $region37: #{tpu_custom_call.1} parent=35 // pred_check
          %p226 = pneg %p225
        $region38: #{tpu_custom_call.1} parent=35 // pred_check_branch
          %228 = sbr.rel (%p226) target = $region40
        $region39: #{tpu_custom_call.1} parent=35 // pred_region
          %vm229 = vcmask 253952
          %230 = vst.msk [vmem:[#allocation2] sm:$0x1] %vm229, -inf
          %231 = vst.msk [vmem:[#allocation3] sm:$0x1] %vm229, 0.0
          %vm232 = vcmask 261120
          %233 = vst.msk [vmem:[#allocation4] sm:$0xff] %vm232, 0.0
          %234 = vst.msk [vmem:[#allocation4 + $0x8] sm:$0xff] %vm232, 0.0
          %235 = vst.msk [vmem:[#allocation4 + $0x10] sm:$0xff] %vm232, 0.0
          %236 = vst.msk [vmem:[#allocation4 + $0x18] sm:$0xff] %vm232, 0.0
        $region40: #{tpu_custom_call.1} parent=35 // pred_fallthru
          _
        %v237 = vld [vmem:[%s222] sm:$0xff]
        %v238 = vld [vmem:[%s222 + $0x8] sm:$0xff]
        %v239 = vld [vmem:[%s222 + $0x10] sm:$0xff]
        %v240 = vld [vmem:[%s222 + $0x18] sm:$0xff]
        %v241 = vld [vmem:[%s222 + $0x20] sm:$0xff]
        %v242 = vld [vmem:[%s222 + $0x28] sm:$0xff]
        %v243 = vld [vmem:[%s222 + $0x30] sm:$0xff]
        %v244 = vld [vmem:[%s222 + $0x38] sm:$0xff]
        %v245 = vld [vmem:[%s222 + $0x40] sm:$0xff]
        %v246 = vld [vmem:[%s222 + $0x48] sm:$0xff]
        %v247 = vld [vmem:[%s222 + $0x50] sm:$0xff]
        %v248 = vld [vmem:[%s222 + $0x58] sm:$0xff]
        %v249 = vld [vmem:[%s222 + $0x60] sm:$0xff]
        %v250 = vld [vmem:[%s222 + $0x68] sm:$0xff]
        %v251 = vld [vmem:[%s222 + $0x70] sm:$0xff]
        %v252 = vld [vmem:[%s222 + $0x78] sm:$0xff]
        %v253 = vld [vmem:[%s3] sm:$0x1]
        %vm254 = vcmask 64512
        %v255 = vsel %vm254, %v237, -inf
        %256 = vmax.xlane.f32.xlu0 %v255
        %v257 = vpop.xlane.xlu0 %256
        %v258 = vsel %vm254, %v238, -inf
        %259 = vmax.xlane.f32.xlu0 %v258
        %v260 = vpop.xlane.xlu0 %259
        %v261 = vsel %vm254, %v239, -inf
        %262 = vmax.xlane.f32.xlu0 %v261
        %v263 = vpop.xlane.xlu0 %262
        %v264 = vsel %vm254, %v240, -inf
        %265 = vmax.xlane.f32.xlu0 %v264
        %v266 = vpop.xlane.xlu0 %265
        %v267 = vsel %vm254, %v241, -inf
        %268 = vmax.xlane.f32.xlu0 %v267
        %v269 = vpop.xlane.xlu0 %268
        %v270 = vsel %vm254, %v242, -inf
        %271 = vmax.xlane.f32.xlu0 %v270
        %v272 = vpop.xlane.xlu0 %271
        %v273 = vsel %vm254, %v243, -inf
        %274 = vmax.xlane.f32.xlu0 %v273
        %v275 = vpop.xlane.xlu0 %274
        %v276 = vsel %vm254, %v244, -inf
        %277 = vmax.xlane.f32.xlu0 %v276
        %v278 = vpop.xlane.xlu0 %277
        %v279 = vsel %vm254, %v245, -inf
        %280 = vmax.xlane.f32.xlu0 %v279
        %v281 = vpop.xlane.xlu0 %280
        %v282 = vsel %vm254, %v246, -inf
        %283 = vmax.xlane.f32.xlu0 %v282
        %v284 = vpop.xlane.xlu0 %283
        %v285 = vsel %vm254, %v247, -inf
        %286 = vmax.xlane.f32.xlu0 %v285
        %v287 = vpop.xlane.xlu0 %286
        %v288 = vsel %vm254, %v248, -inf
        %289 = vmax.xlane.f32.xlu0 %v288
        %v290 = vpop.xlane.xlu0 %289
        %v291 = vsel %vm254, %v249, -inf
        %292 = vmax.xlane.f32.xlu0 %v291
        %v293 = vpop.xlane.xlu0 %292
        %v294 = vsel %vm254, %v250, -inf
        %295 = vmax.xlane.f32.xlu0 %v294
        %v296 = vpop.xlane.xlu0 %295
        %v297 = vsel %vm254, %v251, -inf
        %298 = vmax.xlane.f32.xlu0 %v297
        %v299 = vpop.xlane.xlu0 %298
        %v300 = vsel %vm254, %v252, -inf
        %301 = vmax.xlane.f32.xlu0 %v300
        %v302 = vpop.xlane.xlu0 %301
        %v303 = vrcp.pop %v257
        %v304 = vrcp.pop %v260
        %v305 = vrcp.pop %v263
        %v306 = vrcp.pop %v266
        %v307 = vrcp.pop %v269
        %v308 = vrcp.pop %v272
        %v309 = vrcp.pop %v275
        %v310 = vrcp.pop %v278
        %v311 = vrcp.pop %v281
        %v312 = vrcp.pop %v284
        %v313 = vrcp.pop %v287
        %v314 = vrcp.pop %v290
        %v315 = vrcp.pop %v293
        %v316 = vrcp.pop %v296
        %v317 = vrcp.pop %v299
        %v318 = vrcp.pop %v302
        %v319 = vmul.f32 %v237, %v303
        %v320 = vmul.f32 %v238, %v304
        %v321 = vmul.f32 %v239, %v305
        %v322 = vmul.f32 %v240, %v306
        %v323 = vmul.f32 %v241, %v307
        %v324 = vmul.f32 %v242, %v308
        %v325 = vmul.f32 %v243, %v309
        %v326 = vmul.f32 %v244, %v310
        %v327 = vmul.f32 %v245, %v311
        %v328 = vmul.f32 %v246, %v312
        %v329 = vmul.f32 %v247, %v313
        %v330 = vmul.f32 %v248, %v314
        %v331 = vmul.f32 %v249, %v315
        %v332 = vmul.f32 %v250, %v316
        %v333 = vmul.f32 %v251, %v317
        %v334 = vmul.f32 %v252, %v318
        %v335 = vsel %vm254, %v319, 0.0
        %336 = vadd.xlane.f32.xlu0 %v335
        %v337 = vpop.xlane.xlu0 %336
        %v338 = vsel %vm254, %v320, 0.0
        %339 = vadd.xlane.f32.xlu0 %v338
        %v340 = vpop.xlane.xlu0 %339
        %v341 = vsel %vm254, %v321, 0.0
        %342 = vadd.xlane.f32.xlu0 %v341
        %v343 = vpop.xlane.xlu0 %342
        %v344 = vsel %vm254, %v322, 0.0
        %345 = vadd.xlane.f32.xlu0 %v344
        %v346 = vpop.xlane.xlu0 %345
        %v347 = vsel %vm254, %v323, 0.0
        %348 = vadd.xlane.f32.xlu0 %v347
        %v349 = vpop.xlane.xlu0 %348
        %v350 = vsel %vm254, %v324, 0.0
        %351 = vadd.xlane.f32.xlu0 %v350
        %v352 = vpop.xlane.xlu0 %351
        %v353 = vsel %vm254, %v325, 0.0
        %354 = vadd.xlane.f32.xlu0 %v353
        %v355 = vpop.xlane.xlu0 %354
        %v356 = vsel %vm254, %v326, 0.0
        %357 = vadd.xlane.f32.xlu0 %v356
        %v358 = vpop.xlane.xlu0 %357
        %v359 = vsel %vm254, %v327, 0.0
        %360 = vadd.xlane.f32.xlu0 %v359
        %v361 = vpop.xlane.xlu0 %360
        %v362 = vsel %vm254, %v328, 0.0
        %363 = vadd.xlane.f32.xlu0 %v362
        %v364 = vpop.xlane.xlu0 %363
        %v365 = vsel %vm254, %v329, 0.0
        %366 = vadd.xlane.f32.xlu0 %v365
        %v367 = vpop.xlane.xlu0 %366
        %v368 = vsel %vm254, %v330, 0.0
        %369 = vadd.xlane.f32.xlu0 %v368
        %v370 = vpop.xlane.xlu0 %369
        %v371 = vsel %vm254, %v331, 0.0
        %372 = vadd.xlane.f32.xlu0 %v371
        %v373 = vpop.xlane.xlu0 %372
        %v374 = vsel %vm254, %v332, 0.0
        %375 = vadd.xlane.f32.xlu0 %v374
        %v376 = vpop.xlane.xlu0 %375
        %v377 = vsel %vm254, %v333, 0.0
        %378 = vadd.xlane.f32.xlu0 %v377
        %v379 = vpop.xlane.xlu0 %378
        %v380 = vsel %vm254, %v334, 0.0
        %381 = vadd.xlane.f32.xlu0 %v380
        %v382 = vpop.xlane.xlu0 %381
        %v383 = vrcp.pop 8.0
        %v384 = vmul.f32 %v337, %v383
        %v385 = vmul.f32 %v340, %v383
        %v386 = vmul.f32 %v343, %v383
        %v387 = vmul.f32 %v346, %v383
        %v388 = vmul.f32 %v349, %v383
        %v389 = vmul.f32 %v352, %v383
        %v390 = vmul.f32 %v355, %v383
        %v391 = vmul.f32 %v358, %v383
        %v392 = vmul.f32 %v361, %v383
        %v393 = vmul.f32 %v364, %v383
        %v394 = vmul.f32 %v367, %v383
        %v395 = vmul.f32 %v370, %v383
        %v396 = vmul.f32 %v373, %v383
        %v397 = vmul.f32 %v376, %v383
        %v398 = vmul.f32 %v379, %v383
        %v399 = vmul.f32 %v382, %v383
        %v400 = vsub.f32 %v319, %v384
        %v401 = vsub.f32 %v320, %v385
        %v402 = vsub.f32 %v321, %v386
        %v403 = vsub.f32 %v322, %v387
        %v404 = vsub.f32 %v323, %v388
        %v405 = vsub.f32 %v324, %v389
        %v406 = vsub.f32 %v325, %v390
        %v407 = vsub.f32 %v326, %v391
        %v408 = vsub.f32 %v327, %v392
        %v409 = vsub.f32 %v328, %v393
        %v410 = vsub.f32 %v329, %v394
        %v411 = vsub.f32 %v330, %v395
        %v412 = vsub.f32 %v331, %v396
        %v413 = vsub.f32 %v332, %v397
        %v414 = vsub.f32 %v333, %v398
        %v415 = vsub.f32 %v334, %v399
        %v416 = vmul.f32 %v400, %v400
        %v417 = vmul.f32 %v401, %v401
        %v418 = vmul.f32 %v402, %v402
        %v419 = vmul.f32 %v403, %v403
        %v420 = vmul.f32 %v404, %v404
        %v421 = vmul.f32 %v405, %v405
        %v422 = vmul.f32 %v406, %v406
        %v423 = vmul.f32 %v407, %v407
        %v424 = vmul.f32 %v408, %v408
        %v425 = vmul.f32 %v409, %v409
        %v426 = vmul.f32 %v410, %v410
        %v427 = vmul.f32 %v411, %v411
        %v428 = vmul.f32 %v412, %v412
        %v429 = vmul.f32 %v413, %v413
        %v430 = vmul.f32 %v414, %v414
        %v431 = vmul.f32 %v415, %v415
        %v432 = vsel %vm254, %v416, 0.0
        %433 = vadd.xlane.f32.xlu0 %v432
        %v434 = vpop.xlane.xlu0 %433
        %v435 = vsel %vm254, %v417, 0.0
        %436 = vadd.xlane.f32.xlu0 %v435
        %v437 = vpop.xlane.xlu0 %436
        %v438 = vsel %vm254, %v418, 0.0
        %439 = vadd.xlane.f32.xlu0 %v438
        %v440 = vpop.xlane.xlu0 %439
        %v441 = vsel %vm254, %v419, 0.0
        %442 = vadd.xlane.f32.xlu0 %v441
        %v443 = vpop.xlane.xlu0 %442
        %v444 = vsel %vm254, %v420, 0.0
        %445 = vadd.xlane.f32.xlu0 %v444
        %v446 = vpop.xlane.xlu0 %445
        %v447 = vsel %vm254, %v421, 0.0
        %448 = vadd.xlane.f32.xlu0 %v447
        %v449 = vpop.xlane.xlu0 %448
        %v450 = vsel %vm254, %v422, 0.0
        %451 = vadd.xlane.f32.xlu0 %v450
        %v452 = vpop.xlane.xlu0 %451
        %v453 = vsel %vm254, %v423, 0.0
        %454 = vadd.xlane.f32.xlu0 %v453
        %v455 = vpop.xlane.xlu0 %454
        %v456 = vsel %vm254, %v424, 0.0
        %457 = vadd.xlane.f32.xlu0 %v456
        %v458 = vpop.xlane.xlu0 %457
        %v459 = vsel %vm254, %v425, 0.0
        %460 = vadd.xlane.f32.xlu0 %v459
        %v461 = vpop.xlane.xlu0 %460
        %v462 = vsel %vm254, %v426, 0.0
        %463 = vadd.xlane.f32.xlu0 %v462
        %v464 = vpop.xlane.xlu0 %463
        %v465 = vsel %vm254, %v427, 0.0
        %466 = vadd.xlane.f32.xlu0 %v465
        %v467 = vpop.xlane.xlu0 %466
        %v468 = vsel %vm254, %v428, 0.0
        %469 = vadd.xlane.f32.xlu0 %v468
        %v470 = vpop.xlane.xlu0 %469
        %v471 = vsel %vm254, %v429, 0.0
        %472 = vadd.xlane.f32.xlu0 %v471
        %v473 = vpop.xlane.xlu0 %472
        %v474 = vsel %vm254, %v430, 0.0
        %475 = vadd.xlane.f32.xlu0 %v474
        %v476 = vpop.xlane.xlu0 %475
        %v477 = vsel %vm254, %v431, 0.0
        %478 = vadd.xlane.f32.xlu0 %v477
        %v479 = vpop.xlane.xlu0 %478
        %v480 = vmul.f32 %v434, %v383
        %v481 = vmul.f32 %v437, %v383
        %v482 = vmul.f32 %v440, %v383
        %v483 = vmul.f32 %v443, %v383
        %v484 = vmul.f32 %v446, %v383
        %v485 = vmul.f32 %v449, %v383
        %v486 = vmul.f32 %v452, %v383
        %v487 = vmul.f32 %v455, %v383
        %v488 = vmul.f32 %v458, %v383
        %v489 = vmul.f32 %v461, %v383
        %v490 = vmul.f32 %v464, %v383
        %v491 = vmul.f32 %v467, %v383
        %v492 = vmul.f32 %v470, %v383
        %v493 = vmul.f32 %v473, %v383
        %v494 = vmul.f32 %v476, %v383
        %v495 = vmul.f32 %v479, %v383
        %v496 = vadd.f32 %v480, 1e-05
        %v497 = vadd.f32 %v481, 1e-05
        %v498 = vadd.f32 %v482, 1e-05
        %v499 = vadd.f32 %v483, 1e-05
        %v500 = vadd.f32 %v484, 1e-05
        %v501 = vadd.f32 %v485, 1e-05
        %v502 = vadd.f32 %v486, 1e-05
        %v503 = vadd.f32 %v487, 1e-05
        %v504 = vadd.f32 %v488, 1e-05
        %v505 = vadd.f32 %v489, 1e-05
        %v506 = vadd.f32 %v490, 1e-05
        %v507 = vadd.f32 %v491, 1e-05
        %v508 = vadd.f32 %v492, 1e-05
        %v509 = vadd.f32 %v493, 1e-05
        %v510 = vadd.f32 %v494, 1e-05
        %v511 = vadd.f32 %v495, 1e-05
        %v512 = vrsqrt.pop %v496
        %v513 = vrsqrt.pop %v497
        %v514 = vrsqrt.pop %v498
        %v515 = vrsqrt.pop %v499
        %v516 = vrsqrt.pop %v500
        %v517 = vrsqrt.pop %v501
        %v518 = vrsqrt.pop %v502
        %v519 = vrsqrt.pop %v503
        %v520 = vrsqrt.pop %v504
        %v521 = vrsqrt.pop %v505
        %v522 = vrsqrt.pop %v506
        %v523 = vrsqrt.pop %v507
        %v524 = vrsqrt.pop %v508
        %v525 = vrsqrt.pop %v509
        %v526 = vrsqrt.pop %v510
        %v527 = vrsqrt.pop %v511
        %v528 = vmul.f32 %v400, %v512
        %v529 = vmul.f32 %v401, %v513
        %v530 = vmul.f32 %v402, %v514
        %v531 = vmul.f32 %v403, %v515
        %v532 = vmul.f32 %v404, %v516
        %v533 = vmul.f32 %v405, %v517
        %v534 = vmul.f32 %v406, %v518
        %v535 = vmul.f32 %v407, %v519
        %v536 = vmul.f32 %v408, %v520
        %v537 = vmul.f32 %v409, %v521
        %v538 = vmul.f32 %v410, %v522
        %v539 = vmul.f32 %v411, %v523
        %v540 = vmul.f32 %v412, %v524
        %v541 = vmul.f32 %v413, %v525
        %v542 = vmul.f32 %v414, %v526
        %v543 = vmul.f32 %v415, %v527
        %v545 = vlaneseq
        %v546 = vshrl.u32 %v545, 7
        %v547 = vsub.s32 0, %v546
        %v548 = vrot.slane %v253, %v547
        %v550 = vmul.f32 %v528, %v548
        %v551 = vmul.f32 %v529, %v548
        %v552 = vmul.f32 %v530, %v548
        %v553 = vmul.f32 %v531, %v548
        %v554 = vmul.f32 %v532, %v548
        %v555 = vmul.f32 %v533, %v548
        %v556 = vmul.f32 %v534, %v548
        %v557 = vmul.f32 %v535, %v548
        %v558 = vmul.f32 %v536, %v548
        %v559 = vmul.f32 %v537, %v548
        %v560 = vmul.f32 %v538, %v548
        %v561 = vmul.f32 %v539, %v548
        %v562 = vmul.f32 %v540, %v548
        %v563 = vmul.f32 %v541, %v548
        %v564 = vmul.f32 %v542, %v548
        %v565 = vmul.f32 %v543, %v548
        %v566 = vpack.c.bf16 %v551, %v550
        %v567 = vpack.c.bf16 %v553, %v552
        %v568 = vpack.c.bf16 %v555, %v554
        %v569 = vpack.c.bf16 %v557, %v556
        %v570 = vpack.c.bf16 %v559, %v558
        %v571 = vpack.c.bf16 %v561, %v560
        %v572 = vpack.c.bf16 %v563, %v562
        %v573 = vpack.c.bf16 %v565, %v564
        %v574 = vld [vmem:[%s1] sm:$0xf]
        %v576 = vsel %vm254, %v566, 0
        %v579 = vsel %vm254, %v567, 0
        %v582 = vsel %vm254, %v568, 0
        %v585 = vsel %vm254, %v569, 0
        %v588 = vsel %vm254, %v570, 0
        %v591 = vsel %vm254, %v571, 0
        %v594 = vsel %vm254, %v572, 0
        %v597 = vsel %vm254, %v573, 0
        %vm599 = vcmask 1043456
        %v601 = vsel %vm599, %v574, 0
        %603 = vmatprep.subr.bf16.mxu0 0
        %604 = vmatpush1.bf16.msra.mxu0 %v601
        %605 = vmatprep.subr.bf16.mxu0 0
        %606 = vmatpush1.bf16.msra.mxu0 0
        %607 = vmatprep.subr.bf16.mxu0 0
        %608 = vmatpush1.bf16.msra.mxu0 0
        %609 = vmatprep.subr.bf16.mxu0 0
        %610 = vmatpush1.bf16.msra.mxu0 0
        %611 = vmatprep.subr.bf16.mxu0 0
        %612 = vmatpush1.bf16.msra.mxu0 0
        %613 = vmatprep.subr.bf16.mxu0 0
        %614 = vmatpush1.bf16.msra.mxu0 0
        %615 = vmatprep.subr.bf16.mxu0 0
        %616 = vmatpush1.bf16.msra.mxu0 0
        %617 = vmatprep.subr.bf16.mxu0 0
        %618 = vmatpush1.bf16.msra.mxu0 0
        %619 = vmatprep.subr.bf16.mxu0 0
        %620 = vmatpush1.bf16.msra.mxu0 0
        %621 = vmatprep.subr.bf16.mxu0 0
        %622 = vmatpush1.bf16.msra.mxu0 0
        %623 = vmatprep.subr.bf16.mxu0 0
        %624 = vmatpush1.bf16.msra.mxu0 0
        %625 = vmatprep.subr.bf16.mxu0 0
        %626 = vmatpush1.bf16.msra.mxu0 0
        %627 = vmatprep.subr.bf16.mxu0 0
        %628 = vmatpush1.bf16.msra.mxu0 0
        %629 = vmatprep.subr.bf16.mxu0 0
        %630 = vmatpush1.bf16.msra.mxu0 0
        %631 = vmatprep.subr.bf16.mxu0 0
        %632 = vmatpush1.bf16.msra.mxu0 0
        %633 = vmatprep.subr.bf16.mxu0 0
        %634 = vmatpush1.bf16.msra.mxu0 0
        %635 = vmatprep.mubr.bf16.mxu0 0
        %636 = vmatmul.mubr.bf16.gmra.mrb[0].mxu0 %v576
        %v637 = vpop.f32.mrb[0].mxu0
        %v638 = vadd.f32 0.0, %v637
        %v639 = vpop.f32.mrb[0].mxu0
        %v640 = vpop.f32.mrb[0].mxu0
        %v641 = vadd.f32 0.0, %v640
        %v642 = vpop.f32.mrb[0].mxu0
        %643 = vmatprep.mubr.bf16.mxu0 0
        %644 = vmatmul.mubr.bf16.gmra.mrb[0].mxu0 %v579
        %v645 = vpop.f32.mrb[0].mxu0
        %v646 = vadd.f32 0.0, %v645
        %v647 = vpop.f32.mrb[0].mxu0
        %v648 = vpop.f32.mrb[0].mxu0
        %v649 = vadd.f32 0.0, %v648
        %v650 = vpop.f32.mrb[0].mxu0
        %651 = vmatprep.mubr.bf16.mxu0 0
        %652 = vmatmul.mubr.bf16.gmra.mrb[0].mxu0 %v582
        %v653 = vpop.f32.mrb[0].mxu0
        %v654 = vadd.f32 0.0, %v653
        %v655 = vpop.f32.mrb[0].mxu0
        %v656 = vpop.f32.mrb[0].mxu0
        %v657 = vadd.f32 0.0, %v656
        %v658 = vpop.f32.mrb[0].mxu0
        %659 = vmatprep.mubr.bf16.mxu0 0
        %660 = vmatmul.mubr.bf16.gmra.mrb[0].mxu0 %v585
        %v661 = vpop.f32.mrb[0].mxu0
        %v662 = vadd.f32 0.0, %v661
        %v663 = vpop.f32.mrb[0].mxu0
        %v664 = vpop.f32.mrb[0].mxu0
        %v665 = vadd.f32 0.0, %v664
        %v666 = vpop.f32.mrb[0].mxu0
        %667 = vmatprep.mubr.bf16.mxu0 0
        %668 = vmatmul.mubr.bf16.gmra.mrb[0].mxu0 %v588
        %v669 = vpop.f32.mrb[0].mxu0
        %v670 = vadd.f32 0.0, %v669
        %v671 = vpop.f32.mrb[0].mxu0
        %v672 = vpop.f32.mrb[0].mxu0
        %v673 = vadd.f32 0.0, %v672
        %v674 = vpop.f32.mrb[0].mxu0
        %675 = vmatprep.mubr.bf16.mxu0 0
        %676 = vmatmul.mubr.bf16.gmra.mrb[0].mxu0 %v591
        %v677 = vpop.f32.mrb[0].mxu0
        %v678 = vadd.f32 0.0, %v677
        %v679 = vpop.f32.mrb[0].mxu0
        %v680 = vpop.f32.mrb[0].mxu0
        %v681 = vadd.f32 0.0, %v680
        %v682 = vpop.f32.mrb[0].mxu0
        %683 = vmatprep.mubr.bf16.mxu0 0
        %684 = vmatmul.mubr.bf16.gmra.mrb[0].mxu0 %v594
        %v685 = vpop.f32.mrb[0].mxu0
        %v686 = vadd.f32 0.0, %v685
        %v687 = vpop.f32.mrb[0].mxu0
        %v688 = vpop.f32.mrb[0].mxu0
        %v689 = vadd.f32 0.0, %v688
        %v690 = vpop.f32.mrb[0].mxu0
        %691 = vmatprep.mubr.bf16.mxu0 0
        %692 = vmatmul.mubr.bf16.gmra.mrb[0].mxu0 %v597
        %v693 = vpop.f32.mrb[0].mxu0
        %v694 = vadd.f32 0.0, %v693
        %v695 = vpop.f32.mrb[0].mxu0
        %v696 = vpop.f32.mrb[0].mxu0
        %v697 = vadd.f32 0.0, %v696
        %v698 = vpop.f32.mrb[0].mxu0
        %699 = vdwg.mxu0
        %v700 = vld [vmem:[#allocation2] sm:$0x1]
        %vm701 = vcmask 261120
        %v702 = vsel %vm701, %v638, -inf
        %v703 = vsel %vm701, %v641, -inf
        %v704 = vsel %vm701, %v646, -inf
        %v705 = vsel %vm701, %v649, -inf
        %v706 = vsel %vm701, %v654, -inf
        %v707 = vmax.f32 %v702, %v706
        %v708 = vsel %vm701, %v657, -inf
        %v709 = vmax.f32 %v703, %v708
        %v710 = vsel %vm701, %v662, -inf
        %v711 = vmax.f32 %v704, %v710
        %v712 = vsel %vm701, %v665, -inf
        %v713 = vmax.f32 %v705, %v712
        %v714 = vsel %vm701, %v670, -inf
        %v715 = vmax.f32 %v707, %v714
        %v716 = vsel %vm701, %v673, -inf
        %v717 = vmax.f32 %v709, %v716
        %v718 = vsel %vm701, %v678, -inf
        %v719 = vmax.f32 %v711, %v718
        %v720 = vsel %vm701, %v681, -inf
        %v721 = vmax.f32 %v713, %v720
        %v722 = vsel %vm701, %v686, -inf
        %v723 = vmax.f32 %v715, %v722
        %v724 = vsel %vm701, %v689, -inf
        %v725 = vmax.f32 %v717, %v724
        %v726 = vsel %vm701, %v694, -inf
        %v727 = vmax.f32 %v719, %v726
        %v728 = vsel %vm701, %v697, -inf
        %v729 = vmax.f32 %v721, %v728
        %v730 = vmax.f32 %v723, %v725
        %v731 = vmax.f32 %v727, %v729
        %v732 = vmax.f32 %v730, %v731
        %v733 = vrot.slane %v732, 4
        %v734 = vmax.f32 %v732, %v733
        %v735 = vrot.slane %v734, 2
        %v736 = vmax.f32 %v734, %v735
        %v737 = vrot.slane %v736, 1
        %v738 = vmax.f32 %v736, %v737
        %v739 = vmax.f32 %v700, %v738
        %v740 = vsub.f32 %v700, %v739
        %v741 = vmul.f32 %v740, 1.442695
        %v742 = vpow.pop %v741
        %v744 = vlaneseq
        %v745 = vshrl.u32 %v744, 7
        %v746 = vsub.s32 0, %v745
        %v747 = vrot.slane %v739, %v746
        %v749 = vsub.f32 %v638, %v747
        %v750 = vsub.f32 %v641, %v747
        %v751 = vsub.f32 %v646, %v747
        %v752 = vsub.f32 %v649, %v747
        %v753 = vsub.f32 %v654, %v747
        %v754 = vsub.f32 %v657, %v747
        %v755 = vsub.f32 %v662, %v747
        %v756 = vsub.f32 %v665, %v747
        %v757 = vsub.f32 %v670, %v747
        %v758 = vsub.f32 %v673, %v747
        %v759 = vsub.f32 %v678, %v747
        %v760 = vsub.f32 %v681, %v747
        %v761 = vsub.f32 %v686, %v747
        %v762 = vsub.f32 %v689, %v747
        %v763 = vsub.f32 %v694, %v747
        %v764 = vsub.f32 %v697, %v747
        %v765 = vmul.f32 %v749, 1.442695
        %v766 = vpow.pop %v765
        %v767 = vmul.f32 %v750, 1.442695
        %v768 = vpow.pop %v767
        %v769 = vmul.f32 %v751, 1.442695
        %v770 = vpow.pop %v769
        %v771 = vmul.f32 %v752, 1.442695
        %v772 = vpow.pop %v771
        %v773 = vmul.f32 %v753, 1.442695
        %v774 = vpow.pop %v773
        %v775 = vmul.f32 %v754, 1.442695
        %v776 = vpow.pop %v775
        %v777 = vmul.f32 %v755, 1.442695
        %v778 = vpow.pop %v777
        %v779 = vmul.f32 %v756, 1.442695
        %v780 = vpow.pop %v779
        %v781 = vmul.f32 %v757, 1.442695
        %v782 = vpow.pop %v781
        %v783 = vmul.f32 %v758, 1.442695
        %v784 = vpow.pop %v783
        %v785 = vmul.f32 %v759, 1.442695
        %v786 = vpow.pop %v785
        %v787 = vmul.f32 %v760, 1.442695
        %v788 = vpow.pop %v787
        %v789 = vmul.f32 %v761, 1.442695
        %v790 = vpow.pop %v789
        %v791 = vmul.f32 %v762, 1.442695
        %v792 = vpow.pop %v791
        %v793 = vmul.f32 %v763, 1.442695
        %v794 = vpow.pop %v793
        %v795 = vmul.f32 %v764, 1.442695
        %v796 = vpow.pop %v795
        %v797 = vld [vmem:[#allocation3] sm:$0x1]
        %v798 = vmul.f32 %v742, %v797
        %v799 = vsel %vm701, %v766, 0.0
        %v800 = vsel %vm701, %v768, 0.0
        %v801 = vadd.f32 %v799, %v800
        %v802 = vsel %vm701, %v770, 0.0
        %v803 = vadd.f32 %v801, %v802
        %v804 = vsel %vm701, %v772, 0.0
        %v805 = vadd.f32 %v803, %v804
        %v806 = vsel %vm701, %v774, 0.0
        %v807 = vadd.f32 %v805, %v806
        %v808 = vsel %vm701, %v776, 0.0
        %v809 = vadd.f32 %v807, %v808
        %v810 = vsel %vm701, %v778, 0.0
        %v811 = vadd.f32 %v809, %v810
        %v812 = vsel %vm701, %v780, 0.0
        %v813 = vadd.f32 %v811, %v812
        %v814 = vsel %vm701, %v782, 0.0
        %v815 = vadd.f32 %v813, %v814
        %v816 = vsel %vm701, %v784, 0.0
        %v817 = vadd.f32 %v815, %v816
        %v818 = vsel %vm701, %v786, 0.0
        %v819 = vadd.f32 %v817, %v818
        %v820 = vsel %vm701, %v788, 0.0
        %v821 = vadd.f32 %v819, %v820
        %v822 = vsel %vm701, %v790, 0.0
        %v823 = vadd.f32 %v821, %v822
        %v824 = vsel %vm701, %v792, 0.0
        %v825 = vadd.f32 %v823, %v824
        %v826 = vsel %vm701, %v794, 0.0
        %v827 = vadd.f32 %v825, %v826
        %v828 = vsel %vm701, %v796, 0.0
        %v829 = vadd.f32 %v827, %v828
        %v830 = vrot.slane %v829, 4
        %v831 = vadd.f32 %v829, %v830
        %v832 = vrot.slane %v831, 2
        %v833 = vadd.f32 %v831, %v832
        %v834 = vrot.slane %v833, 1
        %v835 = vadd.f32 %v833, %v834
        %v836 = vadd.f32 %v798, %v835
        %vm837 = vcmask 253952
        %838 = vst.msk [vmem:[#allocation3] sm:$0x1] %vm837, %v836
        %v839 = vpack.c.bf16 %v641, %v638
        %v840 = vpack.c.bf16 %v649, %v646
        %v841 = vpack.c.bf16 %v657, %v654
        %v842 = vpack.c.bf16 %v665, %v662
        %v843 = vpack.c.bf16 %v673, %v670
        %v844 = vpack.c.bf16 %v681, %v678
        %v845 = vpack.c.bf16 %v689, %v686
        %v846 = vpack.c.bf16 %v697, %v694
        %v847 = vpack.c.bf16 %v768, %v766
        %v848 = vpack.c.bf16 %v772, %v770
        %v849 = vpack.c.bf16 %v776, %v774
        %v850 = vpack.c.bf16 %v780, %v778
        %v851 = vpack.c.bf16 %v784, %v782
        %v852 = vpack.c.bf16 %v788, %v786
        %v853 = vpack.c.bf16 %v792, %v790
        %v854 = vpack.c.bf16 %v796, %v794
        %863 = vrot.lane.b32.xlu0 %v839, 96
        %v864 = vpop.permute.xlu0 %863
        %865 = vrot.lane.b32.xlu0 %v840, 96
        %v866 = vpop.permute.xlu0 %865
        %867 = vrot.lane.b32.xlu0 %v841, 96
        %v868 = vpop.permute.xlu0 %867
        %869 = vrot.lane.b32.xlu0 %v842, 96
        %v870 = vpop.permute.xlu0 %869
        %871 = vrot.lane.b32.xlu0 %v843, 96
        %v872 = vpop.permute.xlu0 %871
        %873 = vrot.lane.b32.xlu0 %v844, 96
        %v874 = vpop.permute.xlu0 %873
        %875 = vrot.lane.b32.xlu0 %v845, 96
        %v876 = vpop.permute.xlu0 %875
        %877 = vrot.lane.b32.xlu0 %v846, 96
        %v878 = vpop.permute.xlu0 %877
        %887 = vxpose.xlu0.c.b16.start [1/8] %v864, 128
        %888 = vxpose.xlu0.c.b16.cont [2/8] %v866, 128
        %889 = vxpose.xlu0.c.b16.cont [3/8] %v868, 128
        %890 = vxpose.xlu0.c.b16.cont [4/8] %v870, 128
        %891 = vxpose.xlu0.c.b16.cont [5/8] %v872, 128
        %892 = vxpose.xlu0.c.b16.cont [6/8] %v874, 128
        %893 = vxpose.xlu0.c.b16.cont [7/8] %v876, 128
        %894 = vxpose.xlu0.c.b16.end [8/8] %v878, 128
        %v895 = vpop.trf.xlu0
        %v896 = vpop.trf.xlu0
        %v897 = vpop.trf.xlu0
        %v898 = vpop.trf.xlu0
        %v899 = vpop.trf.xlu0
        %v900 = vpop.trf.xlu0
        %v901 = vpop.trf.xlu0
        %v902 = vpop.trf.xlu0
        %903 = vmatprep.subr.bf16.mxu0 0
        %904 = vmatpush1.bf16.msra.mxu0 %v847
        %905 = vmatprep.subr.bf16.mxu0 0
        %906 = vmatpush1.bf16.msra.mxu0 %v848
        %907 = vmatprep.subr.bf16.mxu0 0
        %908 = vmatpush1.bf16.msra.mxu0 %v849
        %909 = vmatprep.subr.bf16.mxu0 0
        %910 = vmatpush1.bf16.msra.mxu0 %v850
        %911 = vmatprep.subr.bf16.mxu0 0
        %912 = vmatpush1.bf16.msra.mxu0 %v851
        %913 = vmatprep.subr.bf16.mxu0 0
        %914 = vmatpush1.bf16.msra.mxu0 %v852
        %915 = vmatprep.subr.bf16.mxu0 0
        %916 = vmatpush1.bf16.msra.mxu0 %v853
        %917 = vmatprep.subr.bf16.mxu0 0
        %918 = vmatpush1.bf16.msra.mxu0 %v854
        %919 = vmatprep.subr.bf16.mxu0 0
        %920 = vmatpush1.bf16.msra.mxu0 0
        %921 = vmatprep.subr.bf16.mxu0 0
        %922 = vmatpush1.bf16.msra.mxu0 0
        %923 = vmatprep.subr.bf16.mxu0 0
        %924 = vmatpush1.bf16.msra.mxu0 0
        %925 = vmatprep.subr.bf16.mxu0 0
        %926 = vmatpush1.bf16.msra.mxu0 0
        %927 = vmatprep.subr.bf16.mxu0 0
        %928 = vmatpush1.bf16.msra.mxu0 0
        %929 = vmatprep.subr.bf16.mxu0 0
        %930 = vmatpush1.bf16.msra.mxu0 0
        %931 = vmatprep.subr.bf16.mxu0 0
        %932 = vmatpush1.bf16.msra.mxu0 0
        %933 = vmatprep.subr.bf16.mxu0 0
        %934 = vmatpush1.bf16.msra.mxu0 0
        %935 = vmatprep.mubr.bf16.mxu0 0
        %936 = vmatmul.mubr.bf16.gmra.mrb[0].mxu0 %v895
        %v937 = vpop.f32.mrb[0].mxu0
        %v938 = vadd.f32 0.0, %v937
        %v939 = vpop.f32.mrb[0].mxu0
        %v940 = vpop.f32.mrb[0].mxu0
        %v941 = vadd.f32 0.0, %v940
        %v942 = vpop.f32.mrb[0].mxu0
        %943 = vmatprep.mubr.bf16.mxu0 0
        %944 = vmatmul.mubr.bf16.gmra.mrb[0].mxu0 %v896
        %v945 = vpop.f32.mrb[0].mxu0
        %v946 = vadd.f32 0.0, %v945
        %v947 = vpop.f32.mrb[0].mxu0
        %v948 = vpop.f32.mrb[0].mxu0
        %v949 = vadd.f32 0.0, %v948
        %v950 = vpop.f32.mrb[0].mxu0
        %951 = vdwg.mxu0
        %v952 = vld [vmem:[#allocation4] sm:$0xff]
        %v953 = vld [vmem:[#allocation4 + $0x8] sm:$0xff]
        %v954 = vld [vmem:[#allocation4 + $0x10] sm:$0xff]
        %v955 = vld [vmem:[#allocation4 + $0x18] sm:$0xff]
        %v957 = vlaneseq
        %v958 = vshrl.u32 %v957, 7
        %v959 = vsub.s32 0, %v958
        %v960 = vrot.slane %v742, %v959
        %v962 = vmul.f32 %v952, %v960
        %v963 = vmul.f32 %v953, %v960
        %v964 = vmul.f32 %v954, %v960
        %v965 = vmul.f32 %v955, %v960
        %v966 = vadd.f32 %v962, %v938
        %v967 = vadd.f32 %v963, %v941
        %v968 = vadd.f32 %v964, %v946
        %v969 = vadd.f32 %v965, %v949
        %970 = vst.msk [vmem:[#allocation4] sm:$0xff] %vm701, %v966
        %971 = vst.msk [vmem:[#allocation4 + $0x8] sm:$0xff] %vm701, %v967
        %972 = vst.msk [vmem:[#allocation4 + $0x10] sm:$0xff] %vm701, %v968
        %973 = vst.msk [vmem:[#allocation4 + $0x18] sm:$0xff] %vm701, %v969
        %974 = vst.msk [vmem:[#allocation2] sm:$0x1] %vm837, %v739
        %p975 = scmp.eq.s32.totalorder %s23, 1
        // Predicated region
        $region41: #{tpu_custom_call.1} parent=35 // pred_check
          %p976 = pneg %p975
        $region42: #{tpu_custom_call.1} parent=35 // pred_check_branch
          %978 = sbr.rel (%p976) target = $region44
        $region43: #{tpu_custom_call.1} parent=35 // pred_region
          %v979 = vld [vmem:[#allocation3] sm:$0x1]
          %v980 = vrcp.pop %v979
          %v981 = vmul.f32 %v980, 0.25
          %v982 = vld [vmem:[#allocation4] sm:$0xff]
          %v983 = vld [vmem:[#allocation4 + $0x8] sm:$0xff]
          %v984 = vld [vmem:[#allocation4 + $0x10] sm:$0xff]
          %v985 = vld [vmem:[#allocation4 + $0x18] sm:$0xff]
          %v986 = vld [vmem:[%s2] sm:$0xf]
          %v987 = vld [vmem:[%s2 + $0x4] sm:$0xf]
          %v988 = vld [vmem:[%s2 + $0x8] sm:$0xf]
          %v989 = vld [vmem:[%s2 + $0xc] sm:$0xf]
          %v990 = vunpack.c.l.bf16 %v986
          %v991 = vunpack.c.l.bf16 %v987
          %v992 = vunpack.c.l.bf16 %v988
          %v993 = vunpack.c.l.bf16 %v989
          %v994 = vmul.f32 %v982, %v990
          %v995 = vmul.f32 %v983, %v991
          %v996 = vmul.f32 %v984, %v992
          %v997 = vmul.f32 %v985, %v993
          %v999 = vlaneseq
          %v1000 = vshrl.u32 %v999, 7
          %v1001 = vsub.s32 0, %v1000
          %v1002 = vrot.slane %v981, %v1001
          %v1004 = vmul.f32 %v994, %v1002
          %v1005 = vmul.f32 %v995, %v1002
          %v1006 = vmul.f32 %v996, %v1002
          %v1007 = vmul.f32 %v997, %v1002
          %v1008 = vpack.c.bf16 %v1005, %v1004
          %v1009 = vpack.c.bf16 %v1007, %v1006
          %v1012 = vunpack.c.l.b16 %v1008
          %v1013 = vunpack.c.h.b16 %v1008
          %v1014 = vunpack.c.l.b16 %v1009
          %v1015 = vunpack.c.h.b16 %v1009
          %v1016 = vpack.c.b16 %v1012, %v1012
          %v1017 = vpack.c.b16 %v1013, %v1013
          %v1018 = vpack.c.b16 %v1014, %v1014
          %v1019 = vpack.c.b16 %v1015, %v1015
          %vm1024 = vcmask 257024
          %1025 = vst.msk [vmem:[%s213] sm:$0xf] %vm1024, %v1016
          %1026 = vst.msk [vmem:[%s213 + $0x4] sm:$0xf] %vm1024, %v1017
          %1027 = vst.msk [vmem:[%s213 + $0x8] sm:$0xf] %vm1024, %v1018
          %1028 = vst.msk [vmem:[%s213 + $0xc] sm:$0xf] %vm1024, %v1019
        $region44: #{tpu_custom_call.1} parent=35 // pred_fallthru
          _
        %s1029 = sand.u32 %s129, 1
        %s1030 = scalar_lea.sflag [#allocation6], %s1029
        %s1031 = sand.u32 %s129, 1
        %s1032 = smul.addr %s1031, 16
        %s1033 = scalar_lea.vmem [#allocation5], %s1032
        // Predicated region
        $region45: #{tpu_custom_call.1} parent=35 // pred_check
          %p1034 = pneg %p139
        $region46: #{tpu_custom_call.1} parent=35 // pred_check_branch
          %1036 = sbr.rel (%p1034) target = $region48
        $region47: #{tpu_custom_call.1} parent=35 // pred_region
          %s1038 = ssub.s32 256, 256
          %1039 = vsyncadd %s1030, %s1038
          %s1040 = smul.addr %s22, 4
          %s1041 = smul.addr %s1040, 64
          %s1042 = scalar_lea.hbm %s4, %s1041
          %s1043 = sshll.u32 %s1033, 4
          %s1044 = int_to_ptr.vmem [resolvable:$true] %s1043
          %1049 = dma.vmem_to_hbm [thread:$0]  %s1044, 256, %s1042, %s1030, 64, 64, 4
        $region48: #{tpu_custom_call.1} parent=35 // pred_fallthru
          _
      $region36: #{tpu_custom_call.1} parent=5 // pred_fallthru
        _
      %p1050 = scmp.le.s32.totalorder 2, %s13
      // Predicated region
      $region49: #{tpu_custom_call.1} parent=5 // pred_check
        %p1051 = pneg %p1050
      $region50: #{tpu_custom_call.1} parent=5 // pred_check_branch
        %1053 = sbr.rel (%p1051) target = $region52
      $region51: #{tpu_custom_call.1} parent=5 // pred_region
        %s1054 = ssub.s32 %s13, 2
        // Predicated region
        $region53: #{tpu_custom_call.1} parent=51 // pred_check
          %p1055 = pneg %p145
        $region54: #{tpu_custom_call.1} parent=51 // pred_check_branch
          %1057 = sbr.rel (%p1055) target = $region56
        $region55: #{tpu_custom_call.1} parent=51 // pred_region
          %s1058 = sand.u32 %s130, 1
          %s1059 = scalar_lea.sflag [#allocation6], %s1058
          %s1060 = sand.u32 %s130, 1
          %s1061 = smul.addr %s1060, 16
          %s1062 = scalar_lea.vmem [#allocation5], %s1061
          %1063 = dma.done %s1059, 256
        $region56: #{tpu_custom_call.1} parent=51 // pred_fallthru
          _
      $region52: #{tpu_custom_call.1} parent=5 // pred_fallthru
        _
    $region6: #{tpu_custom_call.1} parent=1 // loop_footer
      %s17 = sadd.s32 1, %s13
    $region7: #{tpu_custom_call.1} parent=1 // loop_footer_branch
      %12 = sbr.rel target = $region3
    $region8: #{tpu_custom_call.1} parent=1 // loop_exit
      _
    %1064 = vsyncpa [#allocation6], 1
    %s1065 = scalar_lea.sflag [#allocation6], 1
    %1066 = vsyncpa %s1065, 1

</llo_original>
